<compile_context>
chip_gen: v5e
topology: v5e:2x2
jax: 0.10.0
libtpu: 0.0.40
codegen_flags: <defaults>
</compile_context>

<pallas_src>
import jax
import jax.numpy as jnp
from jax.experimental import pallas as pl
from jax.experimental.pallas import tpu as pltpu

_SUBLANES = 8
_BN_EPS = 1e-5


def _match_rows(p, n_rows):
    """Params are pre-broadcast to 8 sublanes; return an operand that combines
    elementwise with an [n_rows, D] activation (direct vreg op when n_rows == 8,
    otherwise a 1-row slice that broadcasts)."""
    return p if p.shape[0] == n_rows else p[0:1, :]


def _encoder_kernel(x_ref, w1t_ref, b1_ref, w2t_ref, b2_ref, gamma_ref,
                    beta_ref, o_ref):
    x = x_ref[...]                                   # [B, Cin] f32
    w1t = w1t_ref[...]                               # [Cin, H]
    if w1t.dtype != x.dtype:                         # optional bf16 weight path
        x = x.astype(w1t.dtype)
    b = x.shape[0]

    # Linear 1 + ReLU (f32 accumulation on the MXU).
    h = jnp.dot(x, w1t, preferred_element_type=jnp.float32)        # [B, H]
    h = jnp.maximum(h + _match_rows(b1_ref[...], b), 0.0)

    # Linear 2.
    w2t = w2t_ref[...]                               # [H, Cd]
    hm = h.astype(w2t.dtype) if w2t.dtype != h.dtype else h
    y = jnp.dot(hm, w2t, preferred_element_type=jnp.float32)       # [B, Cd]
    y = y + _match_rows(b2_ref[...], b)

    # BatchNorm1d, training mode: per-feature batch mean and biased variance.
    # Centered two-pass form (no E[y^2] - mean^2 cancellation).
    inv_n = jnp.float32(1.0 / b)
    mean = jnp.sum(y, axis=0, keepdims=True) * inv_n               # [1, Cd]
    d = y - mean
    var = jnp.sum(d * d, axis=0, keepdims=True) * inv_n            # [1, Cd]
    xhat = d * jax.lax.rsqrt(var + _BN_EPS)

    o_ref[...] = (xhat * _match_rows(gamma_ref[...], b)
                  + _match_rows(beta_ref[...], b)).astype(o_ref.dtype)


def prepare_params(w1, b1, w2, b2, gamma, beta, *, use_bf16=False):
    """One-time (hoisted) parameter prep: transpose weights to [in, out] and
    pre-broadcast the per-feature vectors to 8 sublanes.  bf16 weights are
    opt-in only (at small, latency-bound shapes the casts just add VPU /
    relayout work and break f32 parity with the PyTorch module)."""
    w1 = jnp.asarray(w1, jnp.float32)      # [hidden, Cin]   (PyTorch layout)
    b1 = jnp.asarray(b1, jnp.float32)      # [hidden]
    w2 = jnp.asarray(w2, jnp.float32)      # [Cd, hidden]
    b2 = jnp.asarray(b2, jnp.float32)      # [Cd]
    gamma = jnp.asarray(gamma, jnp.float32)
    beta = jnp.asarray(beta, jnp.float32)

    wdt = jnp.bfloat16 if use_bf16 else jnp.float32

    def sublane_bcast(v):                  # [D] -> [8, D], hoisted once
        return jnp.tile(v.reshape(1, -1), (_SUBLANES, 1))

    return dict(
        w1t=jnp.asarray(w1.T, wdt),        # [Cin, hidden]
        b1=sublane_bcast(b1),              # [8, hidden]
        w2t=jnp.asarray(w2.T, wdt),        # [hidden, Cd]
        b2=sublane_bcast(b2),              # [8, Cd]
        gamma=sublane_bcast(gamma),        # [8, Cd]
        beta=sublane_bcast(beta),          # [8, Cd]
    )


def encoder_forward(x, params):
    """x: [B, in_channels] or [G, B, in_channels].  Each group G is an
    independent batch (its own BatchNorm statistics); groups map 1:1 to grid
    steps and shard across TensorCores on v7x."""
    x = jnp.asarray(x, jnp.float32)
    squeeze = x.ndim == 2
    if squeeze:
        x = x[None]
    g, b, cin = x.shape
    w1t, w2t = params["w1t"], params["w2t"]
    hidden = w1t.shape[1]
    cd = w2t.shape[1]

    const = lambda grp: (0, 0)             # params are grid-invariant

    out = pl.pallas_call(
        _encoder_kernel,
        out_shape=jax.ShapeDtypeStruct((g, b, cd), jnp.float32),
        grid=(g,),
        in_specs=[
            pl.BlockSpec((None, b, cin), lambda grp: (grp, 0, 0)),  # x group
            pl.BlockSpec((cin, hidden), const),                     # w1^T
            pl.BlockSpec((_SUBLANES, hidden), const),               # b1
            pl.BlockSpec((hidden, cd), const),                      # w2^T
            pl.BlockSpec((_SUBLANES, cd), const),                   # b2
            pl.BlockSpec((_SUBLANES, cd), const),                   # gamma
            pl.BlockSpec((_SUBLANES, cd), const),                   # beta
        ],
        out_specs=pl.BlockSpec((None, b, cd), lambda grp: (grp, 0, 0)),
        compiler_params=pltpu.CompilerParams(
            dimension_semantics=("parallel",),   # shard groups across v7x TCs
        ),
    )(x, w1t, params["b1"], w2t, params["b2"], params["gamma"], params["beta"])

    return out[0] if squeeze else out


def init_params(key, in_channels, compressed_dim):
    """Deterministic PyTorch-style init: U(-1/sqrt(fan_in), 1/sqrt(fan_in))."""
    k1, k2, k3, k4 = jax.random.split(key, 4)
    bound = 1.0 / (in_channels ** 0.5)
    w1 = jax.random.uniform(k1, (in_channels, in_channels), jnp.float32,
                            -bound, bound)
    b1 = jax.random.uniform(k2, (in_channels,), jnp.float32, -bound, bound)
    w2 = jax.random.uniform(k3, (compressed_dim, in_channels), jnp.float32,
                            -bound, bound)
    b2 = jax.random.uniform(k4, (compressed_dim,), jnp.float32, -bound, bound)
    gamma = jnp.ones((compressed_dim,), jnp.float32)   # BatchNorm1d affine init
    beta = jnp.zeros((compressed_dim,), jnp.float32)
    return w1, b1, w2, b2, gamma, beta


def _reference(x, w1, b1, w2, b2, gamma, beta):
    h = jnp.maximum(x @ w1.T + b1, 0.0)
    y = h @ w2.T + b2
    mean = y.mean(0, keepdims=True)
    var = ((y - mean) ** 2).mean(0, keepdims=True)
    return (y - mean) / jnp.sqrt(var + _BN_EPS) * gamma + beta


if __name__ == "__main__":
    in_channels = 32
    compressed_dim = 16
    batch = 8
    groups = 2   # stacked independent batches: amortizes launch, feeds 2 TCs on v7x

    key = jax.random.PRNGKey(0)
    kx, kp = jax.random.split(key)
    w1, b1, w2, b2, gamma, beta = init_params(kp, in_channels, compressed_dim)
    params = prepare_params(w1, b1, w2, b2, gamma, beta)   # hoisted, reusable

    # Single batch [B, Cin].
    x = jax.random.normal(kx, (batch, in_channels), jnp.float32)
    out = encoder_forward(x, params)
    jax.block_until_ready(out)
    assert out.shape == (batch, compressed_dim)
    ref = _reference(x, w1, b1, w2, b2, gamma, beta)
    assert jnp.allclose(out, ref, atol=1e-2, rtol=1e-2), "single-batch mismatch"

    # Stacked independent batches [G, B, Cin] -> one call, one grid step each.
    xs = jax.random.normal(jax.random.PRNGKey(1),
                           (groups, batch, in_channels), jnp.float32)
    outs = encoder_forward(xs, params)
    jax.block_until_ready(outs)
    assert outs.shape == (groups, batch, compressed_dim)
    for gi in range(groups):
        refg = _reference(xs[gi], w1, b1, w2, b2, gamma, beta)
        assert jnp.allclose(outs[gi], refg, atol=1e-2, rtol=1e-2), "group mismatch"

    print("KERNEL_OK")
</pallas_src>

<mosaic_0001>
module attributes {stable_mosaic.version = 11 : i64} {
  func.func @_encoder_kernel(%arg0: i32, %arg1: memref<1x8x32xf32, #tpu.memory_space<vmem>>, %arg2: memref<32x32xf32, #tpu.memory_space<vmem>>, %arg3: memref<8x32xf32, #tpu.memory_space<vmem>>, %arg4: memref<32x16xf32, #tpu.memory_space<vmem>>, %arg5: memref<8x16xf32, #tpu.memory_space<vmem>>, %arg6: memref<8x16xf32, #tpu.memory_space<vmem>>, %arg7: memref<8x16xf32, #tpu.memory_space<vmem>>, %arg8: memref<1x8x16xf32, #tpu.memory_space<vmem>>) attributes {dimension_semantics = [#tpu.dimension_semantics<parallel>], iteration_bounds = array<i64: 1>, scalar_prefetch = 0 : i64, scratch_operands = 0 : i64, tpu.core_type = #tpu.core_type<tc>, window_params = [{transform_indices = @transform_0, window_bounds = array<i64: 1, 8, 32>}, {pipeline_mode = #tpu.pipeline_mode<synchronous>, transform_indices = @transform_1, window_bounds = array<i64: 32, 32>}, {pipeline_mode = #tpu.pipeline_mode<synchronous>, transform_indices = @transform_2, window_bounds = array<i64: 8, 32>}, {pipeline_mode = #tpu.pipeline_mode<synchronous>, transform_indices = @transform_3, window_bounds = array<i64: 32, 16>}, {pipeline_mode = #tpu.pipeline_mode<synchronous>, transform_indices = @transform_4, window_bounds = array<i64: 8, 16>}, {pipeline_mode = #tpu.pipeline_mode<synchronous>, transform_indices = @transform_5, window_bounds = array<i64: 8, 16>}, {pipeline_mode = #tpu.pipeline_mode<synchronous>, transform_indices = @transform_6, window_bounds = array<i64: 8, 16>}, {transform_indices = @transform_7, window_bounds = array<i64: 1, 8, 16>}]} {
    %c0 = arith.constant 0 : index
    %c0_0 = arith.constant 0 : index
    %c0_1 = arith.constant 0 : index
    %0 = vector.load %arg1[%c0, %c0_0, %c0_1] : memref<1x8x32xf32, #tpu.memory_space<vmem>>, vector<1x8x32xf32>
    %1 = vector.shape_cast %0 : vector<1x8x32xf32> to vector<8x32xf32>
    %c0_2 = arith.constant 0 : index
    %c0_3 = arith.constant 0 : index
    %2 = vector.load %arg2[%c0_2, %c0_3] : memref<32x32xf32, #tpu.memory_space<vmem>>, vector<32x32xf32>
    %cst = arith.constant dense<0.000000e+00> : vector<8x32xf32>
    %3 = tpu.matmul %1, %2, %cst {dimension_numbers = #tpu.dot_dimension_numbers<[1], [0], [0], [1], [0, 0, 1, 1], [], []>} : vector<8x32xf32>, vector<32x32xf32>, vector<8x32xf32> -> vector<8x32xf32>
    %c0_4 = arith.constant 0 : index
    %c0_5 = arith.constant 0 : index
    %4 = vector.load %arg3[%c0_4, %c0_5] : memref<8x32xf32, #tpu.memory_space<vmem>>, vector<8x32xf32>
    %5 = arith.addf %3, %4 : vector<8x32xf32>
    %cst_6 = arith.constant 0.000000e+00 : f32
    %6 = vector.broadcast %cst_6 : f32 to vector<8x32xf32>
    %7 = arith.maximumf %5, %6 : vector<8x32xf32>
    %c0_7 = arith.constant 0 : index
    %c0_8 = arith.constant 0 : index
    %8 = vector.load %arg4[%c0_7, %c0_8] : memref<32x16xf32, #tpu.memory_space<vmem>>, vector<32x16xf32>
    %cst_9 = arith.constant dense<0.000000e+00> : vector<8x16xf32>
    %9 = tpu.matmul %7, %8, %cst_9 {dimension_numbers = #tpu.dot_dimension_numbers<[1], [0], [0], [1], [0, 0, 1, 1], [], []>} : vector<8x32xf32>, vector<32x16xf32>, vector<8x16xf32> -> vector<8x16xf32>
    %c0_10 = arith.constant 0 : index
    %c0_11 = arith.constant 0 : index
    %10 = vector.load %arg5[%c0_10, %c0_11] : memref<8x16xf32, #tpu.memory_space<vmem>>, vector<8x16xf32>
    %11 = arith.addf %9, %10 : vector<8x16xf32>
    %cst_12 = arith.constant dense<0.000000e+00> : vector<16xf32>
    %12 = vector.multi_reduction <add>, %11, %cst_12 [0] : vector<8x16xf32> to vector<16xf32>
    %13 = vector.shape_cast %12 : vector<16xf32> to vector<1x16xf32>
    %cst_13 = arith.constant 1.250000e-01 : f32
    %14 = vector.broadcast %cst_13 : f32 to vector<1x16xf32>
    %15 = arith.mulf %13, %14 : vector<1x16xf32>
    %16 = vector.broadcast %15 : vector<1x16xf32> to vector<8x16xf32>
    %17 = arith.subf %11, %16 : vector<8x16xf32>
    %18 = arith.mulf %17, %17 : vector<8x16xf32>
    %cst_14 = arith.constant dense<0.000000e+00> : vector<16xf32>
    %19 = vector.multi_reduction <add>, %18, %cst_14 [0] : vector<8x16xf32> to vector<16xf32>
    %20 = vector.shape_cast %19 : vector<16xf32> to vector<1x16xf32>
    %cst_15 = arith.constant 1.250000e-01 : f32
    %21 = vector.broadcast %cst_15 : f32 to vector<1x16xf32>
    %22 = arith.mulf %20, %21 : vector<1x16xf32>
    %cst_16 = arith.constant 9.99999974E-6 : f32
    %23 = vector.broadcast %cst_16 : f32 to vector<1x16xf32>
    %24 = arith.addf %22, %23 : vector<1x16xf32>
    %25 = math.rsqrt %24 : vector<1x16xf32>
    %26 = vector.broadcast %25 : vector<1x16xf32> to vector<8x16xf32>
    %27 = arith.mulf %17, %26 : vector<8x16xf32>
    %c0_17 = arith.constant 0 : index
    %c0_18 = arith.constant 0 : index
    %28 = vector.load %arg6[%c0_17, %c0_18] : memref<8x16xf32, #tpu.memory_space<vmem>>, vector<8x16xf32>
    %29 = arith.mulf %27, %28 : vector<8x16xf32>
    %c0_19 = arith.constant 0 : index
    %c0_20 = arith.constant 0 : index
    %30 = vector.load %arg7[%c0_19, %c0_20] : memref<8x16xf32, #tpu.memory_space<vmem>>, vector<8x16xf32>
    %31 = arith.addf %29, %30 : vector<8x16xf32>
    %c0_21 = arith.constant 0 : index
    %c0_22 = arith.constant 0 : index
    %c0_23 = arith.constant 0 : index
    %32 = vector.load %arg8[%c0_21, %c0_22, %c0_23] : memref<1x8x16xf32, #tpu.memory_space<vmem>>, vector<1x8x16xf32>
    %33 = vector.shape_cast %32 : vector<1x8x16xf32> to vector<8x16xf32>
    %34 = vector.shape_cast %31 : vector<8x16xf32> to vector<1x8x16xf32>
    tpu.vector_store %arg8[%c0_21, %c0_22, %c0_23], %34 {strides = array<i32>} : memref<1x8x16xf32, #tpu.memory_space<vmem>>, vector<1x8x16xf32>,
    return
  }
  func.func @transform_0(%arg0: i32) -> (i32, i32, i32) {
    %c0_i32 = arith.constant 0 : i32
    %c0_i32_0 = arith.constant 0 : i32
    %c0_i32_1 = arith.constant 0 : i32
    return %arg0, %c0_i32, %c0_i32_0 : i32, i32, i32
  }
  func.func @transform_1(%arg0: i32) -> (i32, i32) {
    %c0_i32 = arith.constant 0 : i32
    %c0_i32_0 = arith.constant 0 : i32
    %c0_i32_1 = arith.constant 0 : i32
    return %c0_i32, %c0_i32_0 : i32, i32
  }
  func.func @transform_2(%arg0: i32) -> (i32, i32) {
    %c0_i32 = arith.constant 0 : i32
    %c0_i32_0 = arith.constant 0 : i32
    %c0_i32_1 = arith.constant 0 : i32
    return %c0_i32, %c0_i32_0 : i32, i32
  }
  func.func @transform_3(%arg0: i32) -> (i32, i32) {
    %c0_i32 = arith.constant 0 : i32
    %c0_i32_0 = arith.constant 0 : i32
    %c0_i32_1 = arith.constant 0 : i32
    return %c0_i32, %c0_i32_0 : i32, i32
  }
  func.func @transform_4(%arg0: i32) -> (i32, i32) {
    %c0_i32 = arith.constant 0 : i32
    %c0_i32_0 = arith.constant 0 : i32
    %c0_i32_1 = arith.constant 0 : i32
    return %c0_i32, %c0_i32_0 : i32, i32
  }
  func.func @transform_5(%arg0: i32) -> (i32, i32) {
    %c0_i32 = arith.constant 0 : i32
    %c0_i32_0 = arith.constant 0 : i32
    %c0_i32_1 = arith.constant 0 : i32
    return %c0_i32, %c0_i32_0 : i32, i32
  }
  func.func @transform_6(%arg0: i32) -> (i32, i32) {
    %c0_i32 = arith.constant 0 : i32
    %c0_i32_0 = arith.constant 0 : i32
    %c0_i32_1 = arith.constant 0 : i32
    return %c0_i32, %c0_i32_0 : i32, i32
  }
  func.func @transform_7(%arg0: i32) -> (i32, i32, i32) {
    %c0_i32 = arith.constant 0 : i32
    %c0_i32_0 = arith.constant 0 : i32
    %c0_i32_1 = arith.constant 0 : i32
    return %arg0, %c0_i32, %c0_i32_0 : i32, i32, i32
  }
}

</mosaic_0001>

<llo_original>
// kernel: tpu_custom_call.1
$region0: #{tpu_custom_call.1}
  #allocation0 [shape = 'u32[]', space=smem, size = 0x4, offset = 0x4, fixed_abs, tag = 'smem constant byte address 0x4 - core index']
  #allocation1 [shape = 'u32[72,128]{1,0:T(1,128)}', space=vmem, size = 0x9000, scoped, tag = 'internal scratch']
  %s0 = inlined_call_operand.vmem [shape: f32[1,8,32], index: 0, kind: input, shape index: {}]
  %s1 = inlined_call_operand.vmem [shape: f32[32,32], index: 1, kind: input, shape index: {}]
  %s2 = inlined_call_operand.vmem [shape: f32[8,32], index: 2, kind: input, shape index: {}]
  %s3 = inlined_call_operand.vmem [shape: f32[32,16], index: 3, kind: input, shape index: {}]
  %s4 = inlined_call_operand.hbm [shape: f32[8,16], index: 4, kind: input, shape index: {}]
  %s5 = inlined_call_operand.hbm [shape: f32[8,16], index: 5, kind: input, shape index: {}]
  %s6 = inlined_call_operand.hbm [shape: f32[8,16], index: 6, kind: input, shape index: {}]
  %s7 = inlined_call_operand.hbm [shape: f32[1,8,16], index: 7, kind: output, shape index: {}]
  %s8 = sld [smem:[#allocation0]]
  $region50: #{tpu_custom_call.1} parent=0
    _
  %s10 = ssub.s32 1, %s8
  %s11 = scalar_select 0, %s10, %s8
  $region1: #{tpu_custom_call.1} parent=0
    #allocation2 [shape = 'u8[4096]{0}', space=vmem, size = 0x1000, scoped, tag = 'input window, operand 4, single buffered']
    #allocation3 [shape = 's32[1]{0}', space=sflag, size = 0x4, scoped, tag = 'scoped memory for tpu_custom_call.1']
    #allocation4 [shape = 's32[1]{0}', space=sflag, size = 0x4, scoped, tag = 'scoped memory for tpu_custom_call.1']
    #allocation5 [shape = 'u8[4096]{0}', space=vmem, size = 0x1000, scoped, tag = 'input window, operand 5, single buffered']
    #allocation6 [shape = 's32[1]{0}', space=sflag, size = 0x4, scoped, tag = 'scoped memory for tpu_custom_call.1']
    #allocation7 [shape = 'u8[4096]{0}', space=vmem, size = 0x1000, scoped, tag = 'input window, operand 6, single buffered']
    #allocation8 [shape = 'u8[4096]{0}', space=vmem, size = 0x1000, scoped, tag = 'output window, operand 0, single buffered']
    %12 = vsyncpa [#allocation3], 0
    %13 = vsyncpa [#allocation6], 0
    %14 = vsyncpa [#allocation4], 0
    // Predicated region
    $region2: #{tpu_custom_call.1} parent=1 // pred_check
      _
    $region3: #{tpu_custom_call.1} parent=1 // pred_check_branch
      %16 = sbr.rel (0) target = $region5
    $region4: #{tpu_custom_call.1} parent=1 // pred_region
      _
    $region5: #{tpu_custom_call.1} parent=1 // pred_fallthru
      _
    // Predicated region
    $region6: #{tpu_custom_call.1} parent=1 // pred_check
      _
    $region7: #{tpu_custom_call.1} parent=1 // pred_check_branch
      %18 = sbr.rel (0) target = $region9
    $region8: #{tpu_custom_call.1} parent=1 // pred_region
      _
    $region9: #{tpu_custom_call.1} parent=1 // pred_fallthru
      _
    // Predicated region
    $region10: #{tpu_custom_call.1} parent=1 // pred_check
      _
    $region11: #{tpu_custom_call.1} parent=1 // pred_check_branch
      %20 = sbr.rel (0) target = $region13
    $region12: #{tpu_custom_call.1} parent=1 // pred_region
      _
    $region13: #{tpu_custom_call.1} parent=1 // pred_fallthru
      _
    // Predicated region
    $region14: #{tpu_custom_call.1} parent=1 // pred_check
      _
    $region15: #{tpu_custom_call.1} parent=1 // pred_check_branch
      %22 = sbr.rel (0) target = $region17
    $region16: #{tpu_custom_call.1} parent=1 // pred_region
      _
    $region17: #{tpu_custom_call.1} parent=1 // pred_fallthru
      _
    // Predicated region
    $region18: #{tpu_custom_call.1} parent=1 // pred_check
      _
    $region19: #{tpu_custom_call.1} parent=1 // pred_check_branch
      %24 = sbr.rel (0) target = $region21
    $region20: #{tpu_custom_call.1} parent=1 // pred_region
      %26 = vsyncadd [#allocation3], 0
      %s28 = sshll.u32 %s4, 4
      %s29 = int_to_ptr.hbm [resolvable:$true] %s28
      %s30 = sshll.u32 [#allocation2], 4
      %s31 = int_to_ptr.vmem [resolvable:$true] %s30
      %33 = dma.hbm_to_vmem [thread:$0]  %s29, 128, %s31, [#allocation3]
    $region21: #{tpu_custom_call.1} parent=1 // pred_fallthru
      _
    // Predicated region
    $region22: #{tpu_custom_call.1} parent=1 // pred_check
      _
    $region23: #{tpu_custom_call.1} parent=1 // pred_check_branch
      %35 = sbr.rel (0) target = $region25
    $region24: #{tpu_custom_call.1} parent=1 // pred_region
      %37 = vsyncadd [#allocation6], 0
      %s39 = sshll.u32 %s5, 4
      %s40 = int_to_ptr.hbm [resolvable:$true] %s39
      %s41 = sshll.u32 [#allocation5], 4
      %s42 = int_to_ptr.vmem [resolvable:$true] %s41
      %44 = dma.hbm_to_vmem [thread:$0]  %s40, 128, %s42, [#allocation6]
    $region25: #{tpu_custom_call.1} parent=1 // pred_fallthru
      _
    // Predicated region
    $region26: #{tpu_custom_call.1} parent=1 // pred_check
      _
    $region27: #{tpu_custom_call.1} parent=1 // pred_check_branch
      %46 = sbr.rel (0) target = $region29
    $region28: #{tpu_custom_call.1} parent=1 // pred_region
      %48 = vsyncadd [#allocation6], 0
      %s50 = sshll.u32 %s6, 4
      %s51 = int_to_ptr.hbm [resolvable:$true] %s50
      %s52 = sshll.u32 [#allocation7], 4
      %s53 = int_to_ptr.vmem [resolvable:$true] %s52
      %55 = dma.hbm_to_vmem [thread:$0]  %s51, 128, %s53, [#allocation6]
    $region29: #{tpu_custom_call.1} parent=1 // pred_fallthru
      _
    // Predicated region
    $region30: #{tpu_custom_call.1} parent=1 // pred_check
      _
    $region31: #{tpu_custom_call.1} parent=1 // pred_check_branch
      %57 = sbr.rel (0) target = $region33
    $region32: #{tpu_custom_call.1} parent=1 // pred_region
      %59 = dma.done [#allocation3], 128
    $region33: #{tpu_custom_call.1} parent=1 // pred_fallthru
      _
    // Predicated region
    $region34: #{tpu_custom_call.1} parent=1 // pred_check
      _
    $region35: #{tpu_custom_call.1} parent=1 // pred_check_branch
      %61 = sbr.rel (0) target = $region37
    $region36: #{tpu_custom_call.1} parent=1 // pred_region
      %63 = dma.done [#allocation6], 128
    $region37: #{tpu_custom_call.1} parent=1 // pred_fallthru
      _
    // Predicated region
    $region38: #{tpu_custom_call.1} parent=1 // pred_check
      _
    $region39: #{tpu_custom_call.1} parent=1 // pred_check_branch
      %65 = sbr.rel (0) target = $region41
    $region40: #{tpu_custom_call.1} parent=1 // pred_region
      %67 = dma.done [#allocation6], 128
    $region41: #{tpu_custom_call.1} parent=1 // pred_fallthru
      _
    %v68 = vld [vmem:[%s0] sm:$0xff]
    %v69 = vld [vmem:[%s1] sm:$0xff]
    %v70 = vld [vmem:[%s1 + $0x8] sm:$0xff]
    %v71 = vld [vmem:[%s1 + $0x10] sm:$0xff]
    %v72 = vld [vmem:[%s1 + $0x18] sm:$0xff]
    %v73 = vld [vmem:[%s2] sm:$0xff]
    %vm74 = vcmask 261120
    %v76 = vsel %vm74, %v68, 0
    %78 = vmatpush.msra.mxu0 0.0
    %79 = vmatpush.msra.mxu0 0.0
    %80 = vmatpush.msra.mxu0 0.0
    %81 = vmatpush.msra.mxu0 0.0
    %82 = vmatpush.msra.mxu0 0.0
    %83 = vmatpush.msra.mxu0 0.0
    %84 = vmatpush.msra.mxu0 0.0
    %85 = vmatpush.msra.mxu0 0.0
    %86 = vmatpush.msra.mxu0 0.0
    %87 = vmatpush.msra.mxu0 0.0
    %88 = vmatpush.msra.mxu0 0.0
    %89 = vmatpush.msra.mxu0 0.0
    %90 = vmatpush.msra.mxu0 %v72
    %91 = vmatpush.msra.mxu0 %v71
    %92 = vmatpush.msra.mxu0 %v70
    %93 = vmatpush.msra.mxu0 %v69
    %94 = vmatmul.f32.gmra.mxu0 %v76
    %v95 = vpop.f32.mrf.mxu0
    %v96 = vadd.f32 %v73, %v95
    %97 = vdwg.mxu0
    %v98 = vmax.f32 %v96, 0.0
    %v99 = vld [vmem:[%s3] sm:$0xff]
    %v100 = vld [vmem:[%s3 + $0x8] sm:$0xff]
    %v101 = vld [vmem:[%s3 + $0x10] sm:$0xff]
    %v102 = vld [vmem:[%s3 + $0x18] sm:$0xff]
    %v103 = vld [vmem:[#allocation2] sm:$0xff]
    %v105 = vsel %vm74, %v98, 0
    %107 = vmatpush.msra.mxu0 0.0
    %108 = vmatpush.msra.mxu0 0.0
    %109 = vmatpush.msra.mxu0 0.0
    %110 = vmatpush.msra.mxu0 0.0
    %111 = vmatpush.msra.mxu0 0.0
    %112 = vmatpush.msra.mxu0 0.0
    %113 = vmatpush.msra.mxu0 0.0
    %114 = vmatpush.msra.mxu0 0.0
    %115 = vmatpush.msra.mxu0 0.0
    %116 = vmatpush.msra.mxu0 0.0
    %117 = vmatpush.msra.mxu0 0.0
    %118 = vmatpush.msra.mxu0 0.0
    %119 = vmatpush.msra.mxu0 %v102
    %120 = vmatpush.msra.mxu0 %v101
    %121 = vmatpush.msra.mxu0 %v100
    %122 = vmatpush.msra.mxu0 %v99
    %123 = vmatmul.f32.gmra.mxu0 %v105
    %v124 = vpop.f32.mrf.mxu0
    %v125 = vadd.f32 %v103, %v124
    %126 = vdwg.mxu0
    %vm127 = vcmask 130048
    %v128 = vsel %vm127, %v125, 0.0
    %v129 = vrot.slane %v128, 4
    %v130 = vadd.f32 %v128, %v129
    %v131 = vrot.slane %v130, 2
    %v132 = vadd.f32 %v130, %v131
    %v133 = vrot.slane %v132, 1
    %v134 = vadd.f32 %v132, %v133
    %v135 = vmul.f32 %v134, 0.125
    %v136 = vsub.f32 %v125, %v135
    %v137 = vmul.f32 %v136, %v136
    %v138 = vsel %vm127, %v137, 0.0
    %v139 = vrot.slane %v138, 4
    %v140 = vadd.f32 %v138, %v139
    %v141 = vrot.slane %v140, 2
    %v142 = vadd.f32 %v140, %v141
    %v143 = vrot.slane %v142, 1
    %v144 = vadd.f32 %v142, %v143
    %v145 = vmul.f32 %v144, 0.125
    %v146 = vadd.f32 %v145, 1e-05
    %v147 = vrsqrt.pop %v146
    %v148 = vmul.f32 %v147, %v146
    %v149 = vmul.f32 %v148, %v147
    %v150 = vmul.f32 0.5, %v149
    %v151 = vsub.f32 1.5, %v150
    %v152 = vmul.f32 %v147, %v151
    %vm153 = vweird.f32 %v146
    %vm154 = vweird.f32 %v147
    %vm155 = vmor %vm153, %vm154
    %v156 = vsel %vm155, %v147, %v152
    %v157 = vmul.f32 %v136, %v156
    %v158 = vld [vmem:[#allocation5] sm:$0xff]
    %v159 = vmul.f32 %v157, %v158
    %v160 = vld [vmem:[#allocation7] sm:$0xff]
    %v161 = vadd.f32 %v159, %v160
    %162 = vst.msk [vmem:[#allocation8] sm:$0xff] %vm127, %v161
    // Predicated region
    $region42: #{tpu_custom_call.1} parent=1 // pred_check
      _
    $region43: #{tpu_custom_call.1} parent=1 // pred_check_branch
      %164 = sbr.rel (0) target = $region45
    $region44: #{tpu_custom_call.1} parent=1 // pred_region
      %166 = vsyncadd [#allocation4], 0
      %s168 = sshll.u32 [#allocation8], 4
      %s169 = int_to_ptr.vmem [resolvable:$true] %s168
      %s170 = sshll.u32 %s7, 4
      %s171 = int_to_ptr.hbm [resolvable:$true] %s170
      %173 = dma.vmem_to_hbm [thread:$0]  %s169, 128, %s171, [#allocation4]
    $region45: #{tpu_custom_call.1} parent=1 // pred_fallthru
      _
    // Predicated region
    $region46: #{tpu_custom_call.1} parent=1 // pred_check
      _
    $region47: #{tpu_custom_call.1} parent=1 // pred_check_branch
      %175 = sbr.rel (0) target = $region49
    $region48: #{tpu_custom_call.1} parent=1 // pred_region
      %177 = dma.done [#allocation4], 128
    $region49: #{tpu_custom_call.1} parent=1 // pred_fallthru
      _
    %178 = vsyncpa [#allocation3], 1
    %179 = vsyncpa [#allocation6], 1
    %180 = vsyncpa [#allocation4], 1

</llo_original>
